<compile_context>
chip_gen: v5e
topology: v5e:2x2
jax: 0.10.0
libtpu: 0.0.40
codegen_flags: <defaults>
</compile_context>

<pallas_src>
import jax
import jax.numpy as jnp
from jax.experimental import pallas as pl
from jax.experimental.pallas import tpu as pltpu

LANE = 128      # vreg lane width
SUBLANE = 8     # fp32 sublane count
IN_PAD = 16     # input-feature padding granularity (covers fp32(8) and bf16(16) tiles)


def _round_up(x, m):
    return ((x + m - 1) // m) * m


def decoupling_kernel(x_ref,
                      w1_ref, b1_ref,
                      w2_ref, b2_ref,
                      w3_ref, b3_ref,
                      w4_ref, b4_ref,
                      o_ref):
    """Full 4-layer MLP fused in one kernel. Hidden/output dims are lane-padded to 128."""
    cdt = w1_ref.dtype  # MXU input dtype (bf16 or fp32); accumulation stays fp32.

    x = x_ref[...].astype(cdt)
    h = jnp.dot(x, w1_ref[...], preferred_element_type=jnp.float32)
    h = jnp.maximum(h + b1_ref[...], 0.0)                       # fp32 bias + ReLU

    h = jnp.dot(h.astype(cdt), w2_ref[...], preferred_element_type=jnp.float32)
    h = jnp.maximum(h + b2_ref[...], 0.0)

    h = jnp.dot(h.astype(cdt), w3_ref[...], preferred_element_type=jnp.float32)
    h = jnp.maximum(h + b3_ref[...], 0.0)

    out = jnp.dot(h.astype(cdt), w4_ref[...], preferred_element_type=jnp.float32)
    o_ref[...] = (out + b4_ref[...]).astype(o_ref.dtype)        # lane-dense store


def init_params(key, dim_explicit, dim_implicit, hidden_dim):
    """nn.Linear-style init (uniform +/- 1/sqrt(fan_in)); weights stored as (in, out)."""
    dims = [(dim_explicit, hidden_dim),
            (hidden_dim, hidden_dim),
            (hidden_dim, hidden_dim),
            (hidden_dim, dim_implicit)]
    params = {}
    for idx, (fan_in, fan_out) in enumerate(dims, start=1):
        key, kw, kb = jax.random.split(key, 3)
        bound = 1.0 / (fan_in ** 0.5)
        params[f"w{idx}"] = jax.random.uniform(
            kw, (fan_in, fan_out), jnp.float32, -bound, bound)
        params[f"b{idx}"] = jax.random.uniform(
            kb, (1, fan_out), jnp.float32, -bound, bound)
    return params


def prepare_params(params, *, weight_dtype=jnp.bfloat16):
    """Pad weights/biases once, outside the kernel.

    w1 rows (input features) pad only to a multiple of 16; all hidden/output dims pad
    to 128 lanes so every matmul operand and the output store are lane-dense.
    Biases stay fp32 so the bias-add/ReLU epilogue is fp32 on all chips (v5e VPU).
    """
    def pad(a, row_mult, col_mult, dtype):
        r, c = a.shape
        return jnp.pad(a, ((0, _round_up(r, row_mult) - r),
                           (0, _round_up(c, col_mult) - c))).astype(dtype)

    return {
        "w1": pad(params["w1"], IN_PAD, LANE, weight_dtype),
        "b1": pad(params["b1"], 1, LANE, jnp.float32),
        "w2": pad(params["w2"], LANE, LANE, weight_dtype),
        "b2": pad(params["b2"], 1, LANE, jnp.float32),
        "w3": pad(params["w3"], LANE, LANE, weight_dtype),
        "b3": pad(params["b3"], 1, LANE, jnp.float32),
        "w4": pad(params["w4"], LANE, LANE, weight_dtype),
        "b4": pad(params["b4"], 1, LANE, jnp.float32),
    }


def decoupling_forward(x, padded_params, dim_implicit, *, block_b=None):
    """x: (B, dim_explicit) fp32. padded_params: output of prepare_params."""
    B, d_exp = x.shape
    d_exp_p, h_p = padded_params["w1"].shape
    d_imp_p = padded_params["w4"].shape[1]
    assert d_exp <= d_exp_p and dim_implicit <= d_imp_p

    if block_b is None:
        # Single tile for small/medium B (no per-step overhead, MXU-filling M on a
        # sequential-grid chip); 256-row tiles only once B is big enough that each
        # v7x TensorCore still gets >=256 rows under dimension_semantics="parallel".
        B8 = _round_up(B, SUBLANE)
        block_b = B8 if B8 <= 512 else 256
    assert block_b % SUBLANE == 0, "block_b must be a multiple of 8 (fp32 sublanes)"

    B_p = _round_up(B, block_b)
    x_p = jnp.pad(x, ((0, B_p - B), (0, d_exp_p - d_exp)))
    grid = (B_p // block_b,)

    full = lambda i: (0, 0)  # weights/biases resident in VMEM across batch tiles
    resident = dict(pipeline_mode=pl.Buffered(1))  # single buffer for grid-invariant data
    # TODO(synk): for very large hidden dims (fp32 h >= ~1400 on v7x's 64 MiB VMEM),
    # add an inner pltpu.emit_pipeline over hidden-dim chunks instead of keeping all
    # four weight matrices resident.

    wdt = jnp.dtype(padded_params["w1"].dtype).itemsize
    # VMEM budget: single-buffered weights + fp32 biases + double-buffered x/out tiles
    # + fp32 intermediates (and bf16 cast copies) headroom.
    weight_bytes = (d_exp_p * h_p + 2 * h_p * h_p + h_p * d_imp_p) * wdt
    bias_bytes = (3 * h_p + d_imp_p) * 4
    io_bytes = 2 * (block_b * d_exp_p + block_b * d_imp_p) * 4
    inter_bytes = 4 * block_b * h_p * 4
    vmem_limit = int(weight_bytes + bias_bytes + io_bytes + inter_bytes + (4 << 20))
    vmem_limit = min(max(vmem_limit, 8 << 20), 100 << 20)

    flops = 2 * B_p * (d_exp_p * h_p + 2 * h_p * h_p + h_p * d_imp_p)
    bytes_accessed = (
        x_p.size * 4 + weight_bytes + bias_bytes + B_p * d_imp_p * 4)
    cost = pl.CostEstimate(flops=flops, transcendentals=0,
                           bytes_accessed=bytes_accessed)

    out_p = pl.pallas_call(
        decoupling_kernel,
        out_shape=jax.ShapeDtypeStruct((B_p, d_imp_p), x.dtype),
        grid_spec=pltpu.PrefetchScalarGridSpec(
            num_scalar_prefetch=0,
            grid=grid,
            in_specs=[
                pl.BlockSpec((block_b, d_exp_p), lambda i: (i, 0)),
                pl.BlockSpec((d_exp_p, h_p), full, **resident),
                pl.BlockSpec((1, h_p), full, **resident),
                pl.BlockSpec((h_p, h_p), full, **resident),
                pl.BlockSpec((1, h_p), full, **resident),
                pl.BlockSpec((h_p, h_p), full, **resident),
                pl.BlockSpec((1, h_p), full, **resident),
                pl.BlockSpec((h_p, d_imp_p), full, **resident),
                pl.BlockSpec((1, d_imp_p), full, **resident),
            ],
            out_specs=pl.BlockSpec((block_b, d_imp_p), lambda i: (i, 0)),
        ),
        compiler_params=pltpu.CompilerParams(
            dimension_semantics=("parallel",),
            vmem_limit_bytes=vmem_limit),
        cost_estimate=cost,
    )(x_p,
      padded_params["w1"], padded_params["b1"],
      padded_params["w2"], padded_params["b2"],
      padded_params["w3"], padded_params["b3"],
      padded_params["w4"], padded_params["b4"])

    return out_p[:B, :dim_implicit]


def reference_forward(x, params):
    h = jnp.maximum(x @ params["w1"] + params["b1"], 0.0)
    h = jnp.maximum(h @ params["w2"] + params["b2"], 0.0)
    h = jnp.maximum(h @ params["w3"] + params["b3"], 0.0)
    return h @ params["w4"] + params["b4"]


if __name__ == "__main__":
    B, DIM_EXPLICIT, DIM_IMPLICIT, HIDDEN = 16, 16, 8, 32

    key = jax.random.PRNGKey(0)
    key, kx = jax.random.split(key)
    x = jax.random.normal(kx, (B, DIM_EXPLICIT), jnp.float32)
    params = init_params(key, DIM_EXPLICIT, DIM_IMPLICIT, HIDDEN)
    ref = reference_forward(x, params)

    # fp32 weights: near-exact check against the XLA reference (MXU fp32 passes may
    # differ slightly from the XLA default-precision reference).
    padded_f32 = prepare_params(params, weight_dtype=jnp.float32)
    fwd_f32 = jax.jit(lambda xx: decoupling_forward(xx, padded_f32, DIM_IMPLICIT))
    out = jax.block_until_ready(fwd_f32(x))
    assert out.shape == (B, DIM_IMPLICIT)
    assert jnp.allclose(out, ref, atol=1e-3, rtol=1e-3)

    # bf16 weights (default fast path on v5e/v6e/v7x): fp32 accumulation, loose tolerance.
    padded_bf16 = prepare_params(params)
    fwd_bf16 = jax.jit(lambda xx: decoupling_forward(xx, padded_bf16, DIM_IMPLICIT))
    out_bf16 = jax.block_until_ready(fwd_bf16(x))
    assert out_bf16.shape == (B, DIM_IMPLICIT)
    assert jnp.allclose(out_bf16, ref, atol=1e-1, rtol=1e-1)

    print("KERNEL_OK")
</pallas_src>

<mosaic_0001>
module attributes {stable_mosaic.version = 11 : i64} {
  func.func @decoupling_kernel(%arg0: i32, %arg1: memref<16x16xf32, #tpu.memory_space<vmem>>, %arg2: memref<16x128xf32, #tpu.memory_space<vmem>>, %arg3: memref<1x128xf32, #tpu.memory_space<vmem>>, %arg4: memref<128x128xf32, #tpu.memory_space<vmem>>, %arg5: memref<1x128xf32, #tpu.memory_space<vmem>>, %arg6: memref<128x128xf32, #tpu.memory_space<vmem>>, %arg7: memref<1x128xf32, #tpu.memory_space<vmem>>, %arg8: memref<128x128xf32, #tpu.memory_space<vmem>>, %arg9: memref<1x128xf32, #tpu.memory_space<vmem>>, %arg10: memref<16x128xf32, #tpu.memory_space<vmem>>) attributes {dimension_semantics = [#tpu.dimension_semantics<parallel>], iteration_bounds = array<i64: 1>, scalar_prefetch = 0 : i64, scratch_operands = 0 : i64, tpu.core_type = #tpu.core_type<tc>, window_params = [{transform_indices = @transform_0, window_bounds = array<i64: 16, 16>}, {pipeline_mode = #tpu.pipeline_mode<synchronous>, transform_indices = @transform_1, window_bounds = array<i64: 16, 128>}, {pipeline_mode = #tpu.pipeline_mode<synchronous>, transform_indices = @transform_2, window_bounds = array<i64: 1, 128>}, {pipeline_mode = #tpu.pipeline_mode<synchronous>, transform_indices = @transform_3, window_bounds = array<i64: 128, 128>}, {pipeline_mode = #tpu.pipeline_mode<synchronous>, transform_indices = @transform_4, window_bounds = array<i64: 1, 128>}, {pipeline_mode = #tpu.pipeline_mode<synchronous>, transform_indices = @transform_5, window_bounds = array<i64: 128, 128>}, {pipeline_mode = #tpu.pipeline_mode<synchronous>, transform_indices = @transform_6, window_bounds = array<i64: 1, 128>}, {pipeline_mode = #tpu.pipeline_mode<synchronous>, transform_indices = @transform_7, window_bounds = array<i64: 128, 128>}, {pipeline_mode = #tpu.pipeline_mode<synchronous>, transform_indices = @transform_8, window_bounds = array<i64: 1, 128>}, {transform_indices = @transform_9, window_bounds = array<i64: 16, 128>}]} {
    %c0 = arith.constant 0 : index
    %c0_0 = arith.constant 0 : index
    %0 = vector.load %arg1[%c0, %c0_0] : memref<16x16xf32, #tpu.memory_space<vmem>>, vector<16x16xf32>
    %c0_1 = arith.constant 0 : index
    %c0_2 = arith.constant 0 : index
    %1 = vector.load %arg2[%c0_1, %c0_2] : memref<16x128xf32, #tpu.memory_space<vmem>>, vector<16x128xf32>
    %cst = arith.constant dense<0.000000e+00> : vector<16x128xf32>
    %2 = tpu.matmul %0, %1, %cst {dimension_numbers = #tpu.dot_dimension_numbers<[1], [0], [0], [1], [0, 0, 1, 1], [], []>} : vector<16x16xf32>, vector<16x128xf32>, vector<16x128xf32> -> vector<16x128xf32>
    %c0_3 = arith.constant 0 : index
    %c0_4 = arith.constant 0 : index
    %3 = vector.load %arg3[%c0_3, %c0_4] : memref<1x128xf32, #tpu.memory_space<vmem>>, vector<1x128xf32>
    %4 = vector.broadcast %3 : vector<1x128xf32> to vector<16x128xf32>
    %5 = arith.addf %2, %4 : vector<16x128xf32>
    %cst_5 = arith.constant 0.000000e+00 : f32
    %6 = vector.broadcast %cst_5 : f32 to vector<16x128xf32>
    %7 = arith.maximumf %5, %6 : vector<16x128xf32>
    %c0_6 = arith.constant 0 : index
    %c0_7 = arith.constant 0 : index
    %8 = vector.load %arg4[%c0_6, %c0_7] : memref<128x128xf32, #tpu.memory_space<vmem>>, vector<128x128xf32>
    %cst_8 = arith.constant dense<0.000000e+00> : vector<16x128xf32>
    %9 = tpu.matmul %7, %8, %cst_8 {dimension_numbers = #tpu.dot_dimension_numbers<[1], [0], [0], [1], [0, 0, 1, 1], [], []>} : vector<16x128xf32>, vector<128x128xf32>, vector<16x128xf32> -> vector<16x128xf32>
    %c0_9 = arith.constant 0 : index
    %c0_10 = arith.constant 0 : index
    %10 = vector.load %arg5[%c0_9, %c0_10] : memref<1x128xf32, #tpu.memory_space<vmem>>, vector<1x128xf32>
    %11 = vector.broadcast %10 : vector<1x128xf32> to vector<16x128xf32>
    %12 = arith.addf %9, %11 : vector<16x128xf32>
    %cst_11 = arith.constant 0.000000e+00 : f32
    %13 = vector.broadcast %cst_11 : f32 to vector<16x128xf32>
    %14 = arith.maximumf %12, %13 : vector<16x128xf32>
    %c0_12 = arith.constant 0 : index
    %c0_13 = arith.constant 0 : index
    %15 = vector.load %arg6[%c0_12, %c0_13] : memref<128x128xf32, #tpu.memory_space<vmem>>, vector<128x128xf32>
    %cst_14 = arith.constant dense<0.000000e+00> : vector<16x128xf32>
    %16 = tpu.matmul %14, %15, %cst_14 {dimension_numbers = #tpu.dot_dimension_numbers<[1], [0], [0], [1], [0, 0, 1, 1], [], []>} : vector<16x128xf32>, vector<128x128xf32>, vector<16x128xf32> -> vector<16x128xf32>
    %c0_15 = arith.constant 0 : index
    %c0_16 = arith.constant 0 : index
    %17 = vector.load %arg7[%c0_15, %c0_16] : memref<1x128xf32, #tpu.memory_space<vmem>>, vector<1x128xf32>
    %18 = vector.broadcast %17 : vector<1x128xf32> to vector<16x128xf32>
    %19 = arith.addf %16, %18 : vector<16x128xf32>
    %cst_17 = arith.constant 0.000000e+00 : f32
    %20 = vector.broadcast %cst_17 : f32 to vector<16x128xf32>
    %21 = arith.maximumf %19, %20 : vector<16x128xf32>
    %c0_18 = arith.constant 0 : index
    %c0_19 = arith.constant 0 : index
    %22 = vector.load %arg8[%c0_18, %c0_19] : memref<128x128xf32, #tpu.memory_space<vmem>>, vector<128x128xf32>
    %cst_20 = arith.constant dense<0.000000e+00> : vector<16x128xf32>
    %23 = tpu.matmul %21, %22, %cst_20 {dimension_numbers = #tpu.dot_dimension_numbers<[1], [0], [0], [1], [0, 0, 1, 1], [], []>} : vector<16x128xf32>, vector<128x128xf32>, vector<16x128xf32> -> vector<16x128xf32>
    %c0_21 = arith.constant 0 : index
    %c0_22 = arith.constant 0 : index
    %24 = vector.load %arg9[%c0_21, %c0_22] : memref<1x128xf32, #tpu.memory_space<vmem>>, vector<1x128xf32>
    %25 = vector.broadcast %24 : vector<1x128xf32> to vector<16x128xf32>
    %26 = arith.addf %23, %25 : vector<16x128xf32>
    %c0_23 = arith.constant 0 : index
    %c0_24 = arith.constant 0 : index
    %27 = vector.load %arg10[%c0_23, %c0_24] : memref<16x128xf32, #tpu.memory_space<vmem>>, vector<16x128xf32>
    tpu.vector_store %arg10[%c0_23, %c0_24], %26 {strides = array<i32>} : memref<16x128xf32, #tpu.memory_space<vmem>>, vector<16x128xf32>,
    return
  }
  func.func @transform_0(%arg0: i32) -> (i32, i32) {
    %c0_i32 = arith.constant 0 : i32
    %c0_i32_0 = arith.constant 0 : i32
    return %arg0, %c0_i32 : i32, i32
  }
  func.func @transform_1(%arg0: i32) -> (i32, i32) {
    %c0_i32 = arith.constant 0 : i32
    %c0_i32_0 = arith.constant 0 : i32
    %c0_i32_1 = arith.constant 0 : i32
    return %c0_i32, %c0_i32_0 : i32, i32
  }
  func.func @transform_2(%arg0: i32) -> (i32, i32) {
    %c0_i32 = arith.constant 0 : i32
    %c0_i32_0 = arith.constant 0 : i32
    %c0_i32_1 = arith.constant 0 : i32
    return %c0_i32, %c0_i32_0 : i32, i32
  }
  func.func @transform_3(%arg0: i32) -> (i32, i32) {
    %c0_i32 = arith.constant 0 : i32
    %c0_i32_0 = arith.constant 0 : i32
    %c0_i32_1 = arith.constant 0 : i32
    return %c0_i32, %c0_i32_0 : i32, i32
  }
  func.func @transform_4(%arg0: i32) -> (i32, i32) {
    %c0_i32 = arith.constant 0 : i32
    %c0_i32_0 = arith.constant 0 : i32
    %c0_i32_1 = arith.constant 0 : i32
    return %c0_i32, %c0_i32_0 : i32, i32
  }
  func.func @transform_5(%arg0: i32) -> (i32, i32) {
    %c0_i32 = arith.constant 0 : i32
    %c0_i32_0 = arith.constant 0 : i32
    %c0_i32_1 = arith.constant 0 : i32
    return %c0_i32, %c0_i32_0 : i32, i32
  }
  func.func @transform_6(%arg0: i32) -> (i32, i32) {
    %c0_i32 = arith.constant 0 : i32
    %c0_i32_0 = arith.constant 0 : i32
    %c0_i32_1 = arith.constant 0 : i32
    return %c0_i32, %c0_i32_0 : i32, i32
  }
  func.func @transform_7(%arg0: i32) -> (i32, i32) {
    %c0_i32 = arith.constant 0 : i32
    %c0_i32_0 = arith.constant 0 : i32
    %c0_i32_1 = arith.constant 0 : i32
    return %c0_i32, %c0_i32_0 : i32, i32
  }
  func.func @transform_8(%arg0: i32) -> (i32, i32) {
    %c0_i32 = arith.constant 0 : i32
    %c0_i32_0 = arith.constant 0 : i32
    %c0_i32_1 = arith.constant 0 : i32
    return %c0_i32, %c0_i32_0 : i32, i32
  }
  func.func @transform_9(%arg0: i32) -> (i32, i32) {
    %c0_i32 = arith.constant 0 : i32
    %c0_i32_0 = arith.constant 0 : i32
    return %arg0, %c0_i32 : i32, i32
  }
}

</mosaic_0001>

<llo_original>
// kernel: _lambda_.1
$region0: #{_lambda_.1}
  #allocation0 [shape = 'u32[]', space=smem, size = 0x4, offset = 0x4, fixed_abs, tag = 'smem constant byte address 0x4 - core index']
  #allocation1 [shape = 'u32[72,128]{1,0:T(1,128)}', space=vmem, size = 0x9000, scoped, tag = 'internal scratch']
  %s0 = inlined_call_operand.hbm [shape: f32[16,16], index: 0, kind: input, shape index: {}]
  %s1 = inlined_call_operand.hbm [shape: f32[16,128], index: 1, kind: input, shape index: {}]
  %s2 = inlined_call_operand.hbm [shape: f32[1,128], index: 2, kind: input, shape index: {}]
  %s3 = inlined_call_operand.hbm [shape: f32[128,128], index: 3, kind: input, shape index: {}]
  %s4 = inlined_call_operand.vmem [shape: f32[1,128], index: 4, kind: input, shape index: {}]
  %s5 = inlined_call_operand.hbm [shape: f32[128,128], index: 5, kind: input, shape index: {}]
  %s6 = inlined_call_operand.vmem [shape: f32[1,128], index: 6, kind: input, shape index: {}]
  %s7 = inlined_call_operand.hbm [shape: f32[128,128], index: 7, kind: input, shape index: {}]
  %s8 = inlined_call_operand.vmem [shape: f32[1,128], index: 8, kind: input, shape index: {}]
  %s9 = inlined_call_operand.vmem [shape: f32[16,128], index: 9, kind: output, shape index: {}]
  %s10 = sld [smem:[#allocation0]]
  $region70: #{_lambda_.1} parent=0
    _
  %s12 = ssub.s32 1, %s10
  %s13 = scalar_select 0, %s12, %s10
  $region1: #{_lambda_.1} parent=0
    #allocation2 [shape = 'u8[8192]{0}', space=vmem, size = 0x2000, scoped, tag = 'input window, operand 0, single buffered']
    #allocation3 [shape = 's32[1]{0}', space=sflag, size = 0x4, scoped, tag = 'scoped memory for _lambda_.1']
    #allocation4 [shape = 'u8[8192]{0}', space=vmem, size = 0x2000, scoped, tag = 'input window, operand 1, single buffered']
    #allocation5 [shape = 's32[1]{0}', space=sflag, size = 0x4, scoped, tag = 'scoped memory for _lambda_.1']
    #allocation6 [shape = 'u8[512]{0}', space=vmem, size = 0x400, scoped, tag = 'input window, operand 2, single buffered']
    #allocation7 [shape = 'u8[65536]{0}', space=vmem, size = 0x10000, scoped, tag = 'input window, operand 3, single buffered']
    #allocation8 [shape = 's32[1]{0}', space=sflag, size = 0x4, scoped, tag = 'scoped memory for _lambda_.1']
    #allocation9 [shape = 'u8[65536]{0}', space=vmem, size = 0x10000, scoped, tag = 'input window, operand 5, single buffered']
    #allocation10 [shape = 'u8[65536]{0}', space=vmem, size = 0x10000, scoped, tag = 'input window, operand 7, single buffered']
    #allocation11 [shape = 's32[1]{0}', space=sflag, size = 0x4, scoped, tag = 'scoped memory for _lambda_.1']
    %14 = vsyncpa [#allocation3], 0
    %15 = vsyncpa [#allocation5], 0
    %16 = vsyncpa [#allocation8], 0
    %17 = vsyncpa [#allocation11], 0
    // Predicated region
    $region2: #{_lambda_.1} parent=1 // pred_check
      _
    $region3: #{_lambda_.1} parent=1 // pred_check_branch
      %19 = sbr.rel (0) target = $region5
    $region4: #{_lambda_.1} parent=1 // pred_region
      %21 = vsyncadd [#allocation3], 0
      %s22 = sshll.u32 %s0, 4
      %s23 = int_to_ptr.hbm [resolvable:$true] %s22
      %s24 = sshll.u32 [#allocation2], 4
      %s25 = int_to_ptr.vmem [resolvable:$true] %s24
      %30 = dma.hbm_to_vmem [thread:$0]  %s23, 256, %s25, [#allocation3], 128, 128, 8
    $region5: #{_lambda_.1} parent=1 // pred_fallthru
      _
    // Predicated region
    $region6: #{_lambda_.1} parent=1 // pred_check
      _
    $region7: #{_lambda_.1} parent=1 // pred_check_branch
      %32 = sbr.rel (0) target = $region9
    $region8: #{_lambda_.1} parent=1 // pred_region
      %34 = vsyncadd [#allocation5], 0
      %s35 = sshll.u32 %s1, 4
      %s36 = int_to_ptr.hbm [resolvable:$true] %s35
      %s37 = sshll.u32 [#allocation4], 4
      %s38 = int_to_ptr.vmem [resolvable:$true] %s37
      %43 = dma.hbm_to_vmem [thread:$0]  %s36, 256, %s38, [#allocation5], 128, 128, 8
    $region9: #{_lambda_.1} parent=1 // pred_fallthru
      _
    // Predicated region
    $region10: #{_lambda_.1} parent=1 // pred_check
      _
    $region11: #{_lambda_.1} parent=1 // pred_check_branch
      %45 = sbr.rel (0) target = $region13
    $region12: #{_lambda_.1} parent=1 // pred_region
      %47 = vsyncadd [#allocation5], 0
      %s49 = sshll.u32 %s2, 4
      %s50 = int_to_ptr.hbm [resolvable:$true] %s49
      %s51 = sshll.u32 [#allocation6], 4
      %s52 = int_to_ptr.vmem [resolvable:$true] %s51
      %54 = dma.hbm_to_vmem [thread:$0]  %s50, 16, %s52, [#allocation5]
    $region13: #{_lambda_.1} parent=1 // pred_fallthru
      _
    // Predicated region
    $region14: #{_lambda_.1} parent=1 // pred_check
      _
    $region15: #{_lambda_.1} parent=1 // pred_check_branch
      %56 = sbr.rel (0) target = $region17
    $region16: #{_lambda_.1} parent=1 // pred_region
      %58 = vsyncadd [#allocation8], 0
      %s59 = sshll.u32 %s3, 4
      %s60 = int_to_ptr.hbm [resolvable:$true] %s59
      %s61 = sshll.u32 [#allocation7], 4
      %s62 = int_to_ptr.vmem [resolvable:$true] %s61
      %67 = dma.hbm_to_vmem [thread:$0]  %s60, 2048, %s62, [#allocation8], 128, 128, 8
    $region17: #{_lambda_.1} parent=1 // pred_fallthru
      _
    // Predicated region
    $region18: #{_lambda_.1} parent=1 // pred_check
      _
    $region19: #{_lambda_.1} parent=1 // pred_check_branch
      %69 = sbr.rel (0) target = $region21
    $region20: #{_lambda_.1} parent=1 // pred_region
      _
    $region21: #{_lambda_.1} parent=1 // pred_fallthru
      _
    // Predicated region
    $region22: #{_lambda_.1} parent=1 // pred_check
      _
    $region23: #{_lambda_.1} parent=1 // pred_check_branch
      %71 = sbr.rel (0) target = $region25
    $region24: #{_lambda_.1} parent=1 // pred_region
      %73 = vsyncadd [#allocation8], 0
      %s74 = sshll.u32 %s5, 4
      %s75 = int_to_ptr.hbm [resolvable:$true] %s74
      %s76 = sshll.u32 [#allocation9], 4
      %s77 = int_to_ptr.vmem [resolvable:$true] %s76
      %82 = dma.hbm_to_vmem [thread:$0]  %s75, 2048, %s77, [#allocation8], 128, 128, 8
    $region25: #{_lambda_.1} parent=1 // pred_fallthru
      _
    // Predicated region
    $region26: #{_lambda_.1} parent=1 // pred_check
      _
    $region27: #{_lambda_.1} parent=1 // pred_check_branch
      %84 = sbr.rel (0) target = $region29
    $region28: #{_lambda_.1} parent=1 // pred_region
      _
    $region29: #{_lambda_.1} parent=1 // pred_fallthru
      _
    // Predicated region
    $region30: #{_lambda_.1} parent=1 // pred_check
      _
    $region31: #{_lambda_.1} parent=1 // pred_check_branch
      %86 = sbr.rel (0) target = $region33
    $region32: #{_lambda_.1} parent=1 // pred_region
      %88 = vsyncadd [#allocation11], 0
      %s89 = sshll.u32 %s7, 4
      %s90 = int_to_ptr.hbm [resolvable:$true] %s89
      %s91 = sshll.u32 [#allocation10], 4
      %s92 = int_to_ptr.vmem [resolvable:$true] %s91
      %97 = dma.hbm_to_vmem [thread:$0]  %s90, 2048, %s92, [#allocation11], 128, 128, 8
    $region33: #{_lambda_.1} parent=1 // pred_fallthru
      _
    // Predicated region
    $region34: #{_lambda_.1} parent=1 // pred_check
      _
    $region35: #{_lambda_.1} parent=1 // pred_check_branch
      %99 = sbr.rel (0) target = $region37
    $region36: #{_lambda_.1} parent=1 // pred_region
      _
    $region37: #{_lambda_.1} parent=1 // pred_fallthru
      _
    // Predicated region
    $region38: #{_lambda_.1} parent=1 // pred_check
      _
    $region39: #{_lambda_.1} parent=1 // pred_check_branch
      %101 = sbr.rel (0) target = $region41
    $region40: #{_lambda_.1} parent=1 // pred_region
      %103 = dma.done [#allocation3], 256
    $region41: #{_lambda_.1} parent=1 // pred_fallthru
      _
    // Predicated region
    $region42: #{_lambda_.1} parent=1 // pred_check
      _
    $region43: #{_lambda_.1} parent=1 // pred_check_branch
      %105 = sbr.rel (0) target = $region45
    $region44: #{_lambda_.1} parent=1 // pred_region
      %107 = dma.done [#allocation5], 256
    $region45: #{_lambda_.1} parent=1 // pred_fallthru
      _
    // Predicated region
    $region46: #{_lambda_.1} parent=1 // pred_check
      _
    $region47: #{_lambda_.1} parent=1 // pred_check_branch
      %109 = sbr.rel (0) target = $region49
    $region48: #{_lambda_.1} parent=1 // pred_region
      %111 = dma.done [#allocation5], 16
    $region49: #{_lambda_.1} parent=1 // pred_fallthru
      _
    // Predicated region
    $region50: #{_lambda_.1} parent=1 // pred_check
      _
    $region51: #{_lambda_.1} parent=1 // pred_check_branch
      %113 = sbr.rel (0) target = $region53
    $region52: #{_lambda_.1} parent=1 // pred_region
      %115 = dma.done [#allocation8], 2048
    $region53: #{_lambda_.1} parent=1 // pred_fallthru
      _
    // Predicated region
    $region54: #{_lambda_.1} parent=1 // pred_check
      _
    $region55: #{_lambda_.1} parent=1 // pred_check_branch
      %117 = sbr.rel (0) target = $region57
    $region56: #{_lambda_.1} parent=1 // pred_region
      %119 = dma.done [#allocation8], 2048
    $region57: #{_lambda_.1} parent=1 // pred_fallthru
      _
    // Predicated region
    $region58: #{_lambda_.1} parent=1 // pred_check
      _
    $region59: #{_lambda_.1} parent=1 // pred_check_branch
      %121 = sbr.rel (0) target = $region61
    $region60: #{_lambda_.1} parent=1 // pred_region
      %123 = dma.done [#allocation11], 2048
    $region61: #{_lambda_.1} parent=1 // pred_fallthru
      _
    %v124 = vld [vmem:[#allocation2] sm:$0xff]
    %v125 = vld [vmem:[#allocation2 + $0x8] sm:$0xff]
    %v126 = vld [vmem:[#allocation4] sm:$0xff]
    %v127 = vld [vmem:[#allocation4 + $0x8] sm:$0xff]
    %v128 = vld [vmem:[#allocation6] sm:$0x1]
    %v130 = vperm.slane %v128, 0
    %vm132 = vcmask 130048
    %v134 = vsel %vm132, %v124, 0
    %v137 = vsel %vm132, %v125, 0
    %139 = vmatpush.msra.mxu0 0.0
    %140 = vmatpush.msra.mxu0 0.0
    %141 = vmatpush.msra.mxu0 0.0
    %142 = vmatpush.msra.mxu0 0.0
    %143 = vmatpush.msra.mxu0 0.0
    %144 = vmatpush.msra.mxu0 0.0
    %145 = vmatpush.msra.mxu0 0.0
    %146 = vmatpush.msra.mxu0 0.0
    %147 = vmatpush.msra.mxu0 0.0
    %148 = vmatpush.msra.mxu0 0.0
    %149 = vmatpush.msra.mxu0 0.0
    %150 = vmatpush.msra.mxu0 0.0
    %151 = vmatpush.msra.mxu0 0.0
    %152 = vmatpush.msra.mxu0 0.0
    %153 = vmatpush.msra.mxu0 %v127
    %154 = vmatpush.msra.mxu0 %v126
    %155 = vmatmul.f32.gmra.mxu0 %v134
    %v156 = vpop.f32.mrf.mxu0
    %v157 = vadd.f32 %v130, %v156
    %158 = vmatmul.f32.gmra.mxu0 %v137
    %v159 = vpop.f32.mrf.mxu0
    %v160 = vadd.f32 %v130, %v159
    %161 = vdwg.mxu0
    %v162 = vmax.f32 %v157, 0.0
    %v163 = vmax.f32 %v160, 0.0
    %v164 = vld [vmem:[#allocation7] sm:$0xff]
    %v165 = vld [vmem:[#allocation7 + $0x8] sm:$0xff]
    %v166 = vld [vmem:[#allocation7 + $0x10] sm:$0xff]
    %v167 = vld [vmem:[#allocation7 + $0x18] sm:$0xff]
    %v168 = vld [vmem:[#allocation7 + $0x20] sm:$0xff]
    %v169 = vld [vmem:[#allocation7 + $0x28] sm:$0xff]
    %v170 = vld [vmem:[#allocation7 + $0x30] sm:$0xff]
    %v171 = vld [vmem:[#allocation7 + $0x38] sm:$0xff]
    %v172 = vld [vmem:[#allocation7 + $0x40] sm:$0xff]
    %v173 = vld [vmem:[#allocation7 + $0x48] sm:$0xff]
    %v174 = vld [vmem:[#allocation7 + $0x50] sm:$0xff]
    %v175 = vld [vmem:[#allocation7 + $0x58] sm:$0xff]
    %v176 = vld [vmem:[#allocation7 + $0x60] sm:$0xff]
    %v177 = vld [vmem:[#allocation7 + $0x68] sm:$0xff]
    %v178 = vld [vmem:[#allocation7 + $0x70] sm:$0xff]
    %v179 = vld [vmem:[#allocation7 + $0x78] sm:$0xff]
    %v180 = vld [vmem:[%s4] sm:$0x1]
    %v182 = vperm.slane %v180, 0
    %184 = vmatpush.msra.mxu0 %v179
    %185 = vmatpush.msra.mxu0 %v178
    %186 = vmatpush.msra.mxu0 %v177
    %187 = vmatpush.msra.mxu0 %v176
    %188 = vmatpush.msra.mxu0 %v175
    %189 = vmatpush.msra.mxu0 %v174
    %190 = vmatpush.msra.mxu0 %v173
    %191 = vmatpush.msra.mxu0 %v172
    %192 = vmatpush.msra.mxu0 %v171
    %193 = vmatpush.msra.mxu0 %v170
    %194 = vmatpush.msra.mxu0 %v169
    %195 = vmatpush.msra.mxu0 %v168
    %196 = vmatpush.msra.mxu0 %v167
    %197 = vmatpush.msra.mxu0 %v166
    %198 = vmatpush.msra.mxu0 %v165
    %199 = vmatpush.msra.mxu0 %v164
    %200 = vmatmul.f32.gmra.mxu0 %v162
    %v201 = vpop.f32.mrf.mxu0
    %v202 = vadd.f32 %v182, %v201
    %203 = vmatmul.f32.gmra.mxu0 %v163
    %v204 = vpop.f32.mrf.mxu0
    %v205 = vadd.f32 %v182, %v204
    %206 = vdwg.mxu0
    %v207 = vmax.f32 %v202, 0.0
    %v208 = vmax.f32 %v205, 0.0
    %v209 = vld [vmem:[#allocation9] sm:$0xff]
    %v210 = vld [vmem:[#allocation9 + $0x8] sm:$0xff]
    %v211 = vld [vmem:[#allocation9 + $0x10] sm:$0xff]
    %v212 = vld [vmem:[#allocation9 + $0x18] sm:$0xff]
    %v213 = vld [vmem:[#allocation9 + $0x20] sm:$0xff]
    %v214 = vld [vmem:[#allocation9 + $0x28] sm:$0xff]
    %v215 = vld [vmem:[#allocation9 + $0x30] sm:$0xff]
    %v216 = vld [vmem:[#allocation9 + $0x38] sm:$0xff]
    %v217 = vld [vmem:[#allocation9 + $0x40] sm:$0xff]
    %v218 = vld [vmem:[#allocation9 + $0x48] sm:$0xff]
    %v219 = vld [vmem:[#allocation9 + $0x50] sm:$0xff]
    %v220 = vld [vmem:[#allocation9 + $0x58] sm:$0xff]
    %v221 = vld [vmem:[#allocation9 + $0x60] sm:$0xff]
    %v222 = vld [vmem:[#allocation9 + $0x68] sm:$0xff]
    %v223 = vld [vmem:[#allocation9 + $0x70] sm:$0xff]
    %v224 = vld [vmem:[#allocation9 + $0x78] sm:$0xff]
    %v225 = vld [vmem:[%s6] sm:$0x1]
    %v227 = vperm.slane %v225, 0
    %229 = vmatpush.msra.mxu0 %v224
    %230 = vmatpush.msra.mxu0 %v223
    %231 = vmatpush.msra.mxu0 %v222
    %232 = vmatpush.msra.mxu0 %v221
    %233 = vmatpush.msra.mxu0 %v220
    %234 = vmatpush.msra.mxu0 %v219
    %235 = vmatpush.msra.mxu0 %v218
    %236 = vmatpush.msra.mxu0 %v217
    %237 = vmatpush.msra.mxu0 %v216
    %238 = vmatpush.msra.mxu0 %v215
    %239 = vmatpush.msra.mxu0 %v214
    %240 = vmatpush.msra.mxu0 %v213
    %241 = vmatpush.msra.mxu0 %v212
    %242 = vmatpush.msra.mxu0 %v211
    %243 = vmatpush.msra.mxu0 %v210
    %244 = vmatpush.msra.mxu0 %v209
    %245 = vmatmul.f32.gmra.mxu0 %v207
    %v246 = vpop.f32.mrf.mxu0
    %v247 = vadd.f32 %v227, %v246
    %248 = vmatmul.f32.gmra.mxu0 %v208
    %v249 = vpop.f32.mrf.mxu0
    %v250 = vadd.f32 %v227, %v249
    %251 = vdwg.mxu0
    %v252 = vmax.f32 %v247, 0.0
    %v253 = vmax.f32 %v250, 0.0
    %v254 = vld [vmem:[#allocation10] sm:$0xff]
    %v255 = vld [vmem:[#allocation10 + $0x8] sm:$0xff]
    %v256 = vld [vmem:[#allocation10 + $0x10] sm:$0xff]
    %v257 = vld [vmem:[#allocation10 + $0x18] sm:$0xff]
    %v258 = vld [vmem:[#allocation10 + $0x20] sm:$0xff]
    %v259 = vld [vmem:[#allocation10 + $0x28] sm:$0xff]
    %v260 = vld [vmem:[#allocation10 + $0x30] sm:$0xff]
    %v261 = vld [vmem:[#allocation10 + $0x38] sm:$0xff]
    %v262 = vld [vmem:[#allocation10 + $0x40] sm:$0xff]
    %v263 = vld [vmem:[#allocation10 + $0x48] sm:$0xff]
    %v264 = vld [vmem:[#allocation10 + $0x50] sm:$0xff]
    %v265 = vld [vmem:[#allocation10 + $0x58] sm:$0xff]
    %v266 = vld [vmem:[#allocation10 + $0x60] sm:$0xff]
    %v267 = vld [vmem:[#allocation10 + $0x68] sm:$0xff]
    %v268 = vld [vmem:[#allocation10 + $0x70] sm:$0xff]
    %v269 = vld [vmem:[#allocation10 + $0x78] sm:$0xff]
    %v270 = vld [vmem:[%s8] sm:$0x1]
    %v272 = vperm.slane %v270, 0
    %274 = vmatpush.msra.mxu0 %v269
    %275 = vmatpush.msra.mxu0 %v268
    %276 = vmatpush.msra.mxu0 %v267
    %277 = vmatpush.msra.mxu0 %v266
    %278 = vmatpush.msra.mxu0 %v265
    %279 = vmatpush.msra.mxu0 %v264
    %280 = vmatpush.msra.mxu0 %v263
    %281 = vmatpush.msra.mxu0 %v262
    %282 = vmatpush.msra.mxu0 %v261
    %283 = vmatpush.msra.mxu0 %v260
    %284 = vmatpush.msra.mxu0 %v259
    %285 = vmatpush.msra.mxu0 %v258
    %286 = vmatpush.msra.mxu0 %v257
    %287 = vmatpush.msra.mxu0 %v256
    %288 = vmatpush.msra.mxu0 %v255
    %289 = vmatpush.msra.mxu0 %v254
    %290 = vmatmul.f32.gmra.mxu0 %v252
    %v291 = vpop.f32.mrf.mxu0
    %v292 = vadd.f32 %v272, %v291
    %293 = vmatmul.f32.gmra.mxu0 %v253
    %v294 = vpop.f32.mrf.mxu0
    %v295 = vadd.f32 %v272, %v294
    %296 = vdwg.mxu0
    %297 = vst [vmem:[%s9] sm:$0xff] %v292
    %298 = vst [vmem:[%s9 + $0x8] sm:$0xff] %v295
    // Predicated region
    $region62: #{_lambda_.1} parent=1 // pred_check
      _
    $region63: #{_lambda_.1} parent=1 // pred_check_branch
      %300 = sbr.rel (0) target = $region65
    $region64: #{_lambda_.1} parent=1 // pred_region
      _
    $region65: #{_lambda_.1} parent=1 // pred_fallthru
      _
    // Predicated region
    $region66: #{_lambda_.1} parent=1 // pred_check
      _
    $region67: #{_lambda_.1} parent=1 // pred_check_branch
      %302 = sbr.rel (0) target = $region69
    $region68: #{_lambda_.1} parent=1 // pred_region
      _
    $region69: #{_lambda_.1} parent=1 // pred_fallthru
      _
    %303 = vsyncpa [#allocation3], 1
    %304 = vsyncpa [#allocation5], 1
    %305 = vsyncpa [#allocation8], 1
    %306 = vsyncpa [#allocation11], 1

</llo_original>
